<compile_context>
chip_gen: v7x
topology: tpu7x:2x2x1
jax: 0.10.0
libtpu: 0.0.40
codegen_flags: <defaults>
</compile_context>

<pallas_src>
import functools

import jax
import jax.numpy as jnp
from jax.experimental import pallas as pl
from jax.experimental.pallas import tpu as pltpu


def _round_up(x: int, m: int) -> int:
    return ((x + m - 1) // m) * m


def _cre_kernel(yhat_ref, y_ref, out_ref, *, psi: float, psi_k: float,
                batch: int, block_rows: int, masked: bool):
    """One batch tile: softmax over classes + class-wise regulated entropy.

    yhat_ref : (TB, C) logits (cast to f32 in-kernel)
    y_ref    : (TB, 1) int32 labels
    out_ref  : (1, 8, 128) f32 — tile partial sum broadcast into a lane-dense
               block; the wrapper reads it back at [i, 0, 0].
    """
    logits = yhat_ref[...].astype(jnp.float32)            # (TB, C)
    y = y_ref[...]                                        # (TB, 1) int32

    # Softmax over the class axis (dim=1).
    m = jnp.max(logits, axis=1, keepdims=True)            # row max (XLU)
    e = jnp.exp(logits - m)                               # EUP
    inv_sum = pl.reciprocal(jnp.sum(e, axis=1, keepdims=True))
    p = e * inv_sum                                       # softmax probs

    # Row-wise max probability: max(e) == exp(0) == 1, so max(p) == 1/sum(e).
    # Reuse the softmax denominator instead of a second cross-lane reduce.
    p_max = inv_sum                                       # (TB, 1)

    # norm = p + psi*K + 1e-10 ; (psi*K + 1e-10) folded at trace time.
    inv_norm = pl.reciprocal(p + (psi_k + 1e-10))
    p_over = p * inv_norm                                 # p   / norm
    psi_over = psi * inv_norm                             # psi / norm
    ce = p_over * jnp.log(p_over + 1e-10)
    ce = ce + (psi_k * inv_norm) * jnp.log(psi_over + 1e-10)   # * K folded
    ce = ce * (p_max + 1e-10)                             # gamma = 1e-10

    # Zero-hot mask fused as a select (no 0/1 float mask materialized),
    # combined with the batch-padding mask when the batch was padded.
    col = jax.lax.broadcasted_iota(jnp.int32, ce.shape, 1)
    drop = col == y
    if masked:
        row = jax.lax.broadcasted_iota(jnp.int32, ce.shape, 0)
        row = row + pl.program_id(0) * block_rows
        drop = drop | (row >= batch)
    ce = jnp.where(drop, 0.0, ce)

    partial = jnp.sum(ce)
    # Lane-dense, unmasked full-width store of the tile partial.
    out_ref[...] = jnp.full(out_ref.shape, partial, jnp.float32)


def classwise_regulated_entropy(yhat: jax.Array, y: jax.Array, *, K: int,
                                psi: float = 1e-7,
                                block_rows: int = 512) -> jax.Array:
    """Pallas TPU implementation of ClasswiseRegulatedEntropy.forward.

    yhat: [B, C] logits (any float dtype), y: [B] int labels.
    Returns a scalar float32 (mean class-wise regulated entropy).
    """
    assert isinstance(K, int) and K > 0, "K must be a positive int."
    B, C = yhat.shape

    # Sublane granularity for the batch tile (f32: 8, bf16: 16, 1-byte: 32).
    itemsize = jnp.dtype(yhat.dtype).itemsize
    sub = {4: 8, 2: 16, 1: 32}.get(itemsize, 8)
    tb = min(_round_up(block_rows, sub), _round_up(B, sub))
    b_pad = _round_up(B, tb)
    num_tiles = b_pad // tb
    masked = b_pad != B

    y2 = y.astype(jnp.int32).reshape(B, 1)
    if masked:
        yhat = jnp.pad(yhat, ((0, b_pad - B), (0, 0)))
        y2 = jnp.pad(y2, ((0, b_pad - B), (0, 0)))

    kernel = functools.partial(
        _cre_kernel,
        psi=float(psi),
        psi_k=float(psi) * float(K),
        batch=B,
        block_rows=tb,
        masked=masked,
    )

    cost = pl.CostEstimate(
        flops=12 * b_pad * C,
        transcendentals=3 * b_pad * C,                    # exp + 2x log
        bytes_accessed=(b_pad * C * itemsize + b_pad * 4
                        + num_tiles * 8 * 128 * 4),
    )

    partials = pl.pallas_call(
        kernel,
        out_shape=jax.ShapeDtypeStruct((num_tiles, 8, 128), jnp.float32),
        grid_spec=pltpu.PrefetchScalarGridSpec(
            num_scalar_prefetch=0,
            grid=(num_tiles,),
            in_specs=[
                pl.BlockSpec((tb, C), lambda i: (i, 0)),   # logits tile
                pl.BlockSpec((tb, 1), lambda i: (i, 0)),   # labels tile
            ],
            out_specs=pl.BlockSpec((1, 8, 128), lambda i: (i, 0, 0)),
        ),
        compiler_params=pltpu.CompilerParams(
            dimension_semantics=("parallel",)),            # independent tiles
        cost_estimate=cost,
    )(yhat, y2)

    return jnp.sum(partials[:, 0, 0]) / jnp.float32(B)


def _reference(yhat, y, *, K, psi=1e-7):
    # Pure-JAX reference mirroring the PyTorch forward, for verification.
    B, C = yhat.shape
    p = jax.nn.softmax(yhat.astype(jnp.float32), axis=1)
    p_max = jnp.max(p, axis=1, keepdims=True)
    norm = p + psi * K + 1e-10
    ce = p / norm * jnp.log(p / norm + 1e-10)
    ce = ce + psi / norm * jnp.log(psi / norm + 1e-10) * K
    ce = ce * (p_max + 1e-10)
    zerohot = 1.0 - jax.nn.one_hot(y, C, dtype=jnp.float32)
    ce = ce * zerohot
    return jnp.sum(ce) / B


if __name__ == "__main__":
    key = jax.random.PRNGKey(0)
    k1, k2 = jax.random.split(key)

    B, C = 8, 16          # batch=8, num classes=16
    K_HP = 5              # hyper-parameter K of the criterion
    PSI = 1e-7

    yhat = jax.random.normal(k1, (B, C), dtype=jnp.float32)
    y = jax.random.randint(k2, (B,), 0, C, dtype=jnp.int32)

    out = classwise_regulated_entropy(yhat, y, K=K_HP, psi=PSI)
    out = jax.block_until_ready(out)

    ref = jax.block_until_ready(_reference(yhat, y, K=K_HP, psi=PSI))
    assert jnp.allclose(out, ref, rtol=1e-4, atol=1e-5), (out, ref)

    print("KERNEL_OK")
</pallas_src>

<mosaic_0001>
module attributes {stable_mosaic.version = 11 : i64} {
  func.func @_cre_kernel(%arg0: i32, %arg1: memref<8x16xf32, #tpu.memory_space<vmem>>, %arg2: memref<8x1xi32, #tpu.memory_space<vmem>>, %arg3: memref<1x8x128xf32, #tpu.memory_space<vmem>>) attributes {dimension_semantics = [#tpu.dimension_semantics<parallel>], iteration_bounds = array<i64: 1>, scalar_prefetch = 0 : i64, scratch_operands = 0 : i64, tpu.core_type = #tpu.core_type<tc>, window_params = [{transform_indices = @transform_0, window_bounds = array<i64: 8, 16>}, {transform_indices = @transform_1, window_bounds = array<i64: 8, 1>}, {transform_indices = @transform_2, window_bounds = array<i64: 1, 8, 128>}]} {
    %c0 = arith.constant 0 : index
    %c0_0 = arith.constant 0 : index
    %0 = vector.load %arg1[%c0, %c0_0] : memref<8x16xf32, #tpu.memory_space<vmem>>, vector<8x16xf32>
    %c0_1 = arith.constant 0 : index
    %c0_2 = arith.constant 0 : index
    %1 = vector.load %arg2[%c0_1, %c0_2] : memref<8x1xi32, #tpu.memory_space<vmem>>, vector<8x1xi32>
    %cst = arith.constant dense<0xFF800000> : vector<8xf32>
    %2 = vector.multi_reduction <maximumf>, %0, %cst [1] : vector<8x16xf32> to vector<8xf32>
    %3 = vector.shape_cast %2 : vector<8xf32> to vector<8x1xf32>
    %4 = vector.broadcast %3 : vector<8x1xf32> to vector<8x16xf32>
    %5 = arith.subf %0, %4 : vector<8x16xf32>
    %6 = math.exp %5 : vector<8x16xf32>
    %cst_3 = arith.constant dense<0.000000e+00> : vector<8xf32>
    %7 = vector.multi_reduction <add>, %6, %cst_3 [1] : vector<8x16xf32> to vector<8xf32>
    %8 = vector.shape_cast %7 : vector<8xf32> to vector<8x1xf32>
    %9 = tpu.reciprocal %8 : vector<8x1xf32> -> vector<8x1xf32>
    %10 = vector.broadcast %9 : vector<8x1xf32> to vector<8x16xf32>
    %11 = arith.mulf %6, %10 : vector<8x16xf32>
    %cst_4 = arith.constant 5.001000e-07 : f32
    %12 = vector.broadcast %cst_4 : f32 to vector<8x16xf32>
    %13 = arith.addf %11, %12 : vector<8x16xf32>
    %14 = tpu.reciprocal %13 : vector<8x16xf32> -> vector<8x16xf32>
    %15 = arith.mulf %11, %14 : vector<8x16xf32>
    %cst_5 = arith.constant 1.000000e-07 : f32
    %16 = vector.broadcast %cst_5 : f32 to vector<8x16xf32>
    %17 = arith.mulf %16, %14 : vector<8x16xf32>
    %cst_6 = arith.constant 1.000000e-10 : f32
    %18 = vector.broadcast %cst_6 : f32 to vector<8x16xf32>
    %19 = arith.addf %15, %18 : vector<8x16xf32>
    %20 = math.log %19 : vector<8x16xf32>
    %21 = arith.mulf %15, %20 : vector<8x16xf32>
    %cst_7 = arith.constant 5.000000e-07 : f32
    %22 = vector.broadcast %cst_7 : f32 to vector<8x16xf32>
    %23 = arith.mulf %22, %14 : vector<8x16xf32>
    %cst_8 = arith.constant 1.000000e-10 : f32
    %24 = vector.broadcast %cst_8 : f32 to vector<8x16xf32>
    %25 = arith.addf %17, %24 : vector<8x16xf32>
    %26 = math.log %25 : vector<8x16xf32>
    %27 = arith.mulf %23, %26 : vector<8x16xf32>
    %28 = arith.addf %21, %27 : vector<8x16xf32>
    %cst_9 = arith.constant 1.000000e-10 : f32
    %29 = vector.broadcast %cst_9 : f32 to vector<8x1xf32>
    %30 = arith.addf %9, %29 : vector<8x1xf32>
    %31 = vector.broadcast %30 : vector<8x1xf32> to vector<8x16xf32>
    %32 = arith.mulf %28, %31 : vector<8x16xf32>
    %33 = tpu.iota {dimensions = array<i32: 1>} : vector<8x16xi32>
    %34 = vector.broadcast %1 : vector<8x1xi32> to vector<8x16xi32>
    %35 = arith.cmpi eq, %33, %34 : vector<8x16xi32>
    %cst_10 = arith.constant 0.000000e+00 : f32
    %36 = vector.broadcast %cst_10 : f32 to vector<8x16xf32>
    %37 = arith.select %35, %36, %32 : vector<8x16xi1>, vector<8x16xf32>
    %38 = vector.shape_cast %37 : vector<8x16xf32> to vector<1x8x16xf32>
    %cst_11 = arith.constant dense<0.000000e+00> : vector<1xf32>
    %39 = vector.multi_reduction <add>, %38, %cst_11 [1, 2] : vector<1x8x16xf32> to vector<1xf32>
    %40 = vector.shape_cast %39 : vector<1xf32> to vector<1x1x1xf32>
    %41 = vector.extract %40[0, 0, 0] : f32 from vector<1x1x1xf32>
    %42 = vector.broadcast %41 : f32 to vector<1x8x128xf32>
    %c0_12 = arith.constant 0 : index
    %c0_13 = arith.constant 0 : index
    %c0_14 = arith.constant 0 : index
    %43 = vector.load %arg3[%c0_12, %c0_13, %c0_14] : memref<1x8x128xf32, #tpu.memory_space<vmem>>, vector<1x8x128xf32>
    tpu.vector_store %arg3[%c0_12, %c0_13, %c0_14], %42 {strides = array<i32>} : memref<1x8x128xf32, #tpu.memory_space<vmem>>, vector<1x8x128xf32>,
    return
  }
  func.func @transform_0(%arg0: i32) -> (i32, i32) {
    %c0_i32 = arith.constant 0 : i32
    %c0_i32_0 = arith.constant 0 : i32
    return %arg0, %c0_i32 : i32, i32
  }
  func.func @transform_1(%arg0: i32) -> (i32, i32) {
    %c0_i32 = arith.constant 0 : i32
    %c0_i32_0 = arith.constant 0 : i32
    return %arg0, %c0_i32 : i32, i32
  }
  func.func @transform_2(%arg0: i32) -> (i32, i32, i32) {
    %c0_i32 = arith.constant 0 : i32
    %c0_i32_0 = arith.constant 0 : i32
    %c0_i32_1 = arith.constant 0 : i32
    return %arg0, %c0_i32, %c0_i32_0 : i32, i32, i32
  }
}

</mosaic_0001>

<llo_original>
// kernel: tpu_custom_call.1
$region0: #{tpu_custom_call.1}
  #allocation0 [shape = 'u32[]', space=smem, size = 0x4, offset = 0x4, fixed_abs, tag = 'smem constant byte address 0x4 - core index']
  #allocation1 [shape = 'u32[144,128]{1,0:T(1,128)}', space=vmem, size = 0x12000, scoped, tag = 'internal scratch']
  %s0 = inlined_call_operand.vmem [shape: f32[8,16], index: 0, kind: input, shape index: {}]
  %s1 = inlined_call_operand.vmem [shape: s32[8,1], index: 1, kind: input, shape index: {}]
  %s2 = inlined_call_operand.hbm [shape: f32[1,8,128], index: 2, kind: output, shape index: {}]
  %s3 = sld [smem:[#allocation0]]
  $region18: #{tpu_custom_call.1} parent=0
    _
  %s5 = ssub.s32 1, %s3
  %s6 = scalar_select 0, %s5, %s3
  $region1: #{tpu_custom_call.1} parent=0
    #allocation2 [shape = 'u8[4096]{0}', space=vmem, size = 0x1000, scoped, tag = 'output window, operand 0, single buffered']
    #allocation3 [shape = 's32[1]{0}', space=sflag, size = 0x4, scoped, tag = 'scoped memory for tpu_custom_call.1']
    %7 = vsyncpa [#allocation3], 0
    // Predicated region
    $region2: #{tpu_custom_call.1} parent=1 // pred_check
      _
    $region3: #{tpu_custom_call.1} parent=1 // pred_check_branch
      %9 = sbr.rel (0) target = $region5
    $region4: #{tpu_custom_call.1} parent=1 // pred_region
      _
    $region5: #{tpu_custom_call.1} parent=1 // pred_fallthru
      _
    // Predicated region
    $region6: #{tpu_custom_call.1} parent=1 // pred_check
      _
    $region7: #{tpu_custom_call.1} parent=1 // pred_check_branch
      %11 = sbr.rel (0) target = $region9
    $region8: #{tpu_custom_call.1} parent=1 // pred_region
      _
    $region9: #{tpu_custom_call.1} parent=1 // pred_fallthru
      _
    %v12 = vld [vmem:[%s0] sm:$0xff]
    %v13 = vld [vmem:[%s1] sm:$0xff]
    %vm14 = vcmask 130048
    %v15 = vsel %vm14, %v12, -inf
    %16 = vmax.xlane.f32.xlu0 %v15
    %v17 = vpop.xlane.xlu0 %16
    %v18 = vsub.f32 %v12, %v17
    %v19 = vmul.f32 %v18, 1.442695
    %v20 = vpow.pop %v19
    %v21 = vsel %vm14, %v20, 0.0
    %22 = vadd.xlane.f32.xlu0 %v21
    %v23 = vpop.xlane.xlu0 %22
    %v24 = vrcp.pop %v23
    %v25 = vmul.f32 %v20, %v24
    %v26 = vadd.f32 %v25, 5.001e-07
    %v27 = vrcp.pop %v26
    %v28 = vmul.f32 %v25, %v27
    %v29 = vmul.f32 %v27, 1e-07
    %v30 = vadd.f32 %v28, 1e-10
    %v31 = vlog2.pop %v30
    %v32 = vmul.f32 %v31, 0.6931472
    %v33 = vmul.f32 %v28, %v32
    %v34 = vmul.f32 %v27, 5e-07
    %v35 = vadd.f32 %v29, 1e-10
    %v36 = vlog2.pop %v35
    %v37 = vmul.f32 %v36, 0.6931472
    %v38 = vmul.f32 %v34, %v37
    %v39 = vadd.f32 %v33, %v38
    %v40 = vadd.f32 %v24, 1e-10
    %v41 = vmul.f32 %v39, %v40
    %v42 = vlaneseq
    %v43 = vand.u32 %v42, 127
    %44 = vset.pattern.permute.xlu0 0
    %45 = vperm.xlu0 %44, %v13
    %v46 = vpop.permute.xlu0 %45
    %vm47 = vcmp.eq.s32.totalorder %v43, %v46
    %v48 = vsel %vm47, 0.0, %v41
    %v49 = vsel %vm14, %v48, 0.0
    %50 = vadd.xlane.f32.xlu0 %v49
    %v51 = vpop.xlane.xlu0 %50
    %v52 = vrot.slane %v51, 4
    %v53 = vadd.f32 %v51, %v52
    %v54 = vrot.slane %v53, 2
    %v55 = vadd.f32 %v53, %v54
    %v56 = vrot.slane %v55, 1
    %v57 = vadd.f32 %v55, %v56
    %s58 = vtos %v57
    %v59 = vstv %s58
    %60 = vst [vmem:[#allocation2] sm:$0xff] %v59
    // Predicated region
    $region10: #{tpu_custom_call.1} parent=1 // pred_check
      _
    $region11: #{tpu_custom_call.1} parent=1 // pred_check_branch
      %62 = sbr.rel (0) target = $region13
    $region12: #{tpu_custom_call.1} parent=1 // pred_region
      %s64 = ssub.s32 128, 128
      %65 = vsyncadd [#allocation3], %s64
      %s67 = sshll.u32 [#allocation2], 4
      %s68 = int_to_ptr.vmem [resolvable:$true] %s67
      %70 = dma.vmem_to_hbm [thread:$0]  %s68, 128, %s2, [#allocation3]
    $region13: #{tpu_custom_call.1} parent=1 // pred_fallthru
      _
    // Predicated region
    $region14: #{tpu_custom_call.1} parent=1 // pred_check
      _
    $region15: #{tpu_custom_call.1} parent=1 // pred_check_branch
      %72 = sbr.rel (0) target = $region17
    $region16: #{tpu_custom_call.1} parent=1 // pred_region
      %73 = dma.done [#allocation3], 128
    $region17: #{tpu_custom_call.1} parent=1 // pred_fallthru
      _
    %74 = vsyncpa [#allocation3], 1

</llo_original>
